<compile_context>
chip_gen: v7x
topology: tpu7x:2x2x1
jax: 0.10.0
libtpu: 0.0.40
codegen_flags: <defaults>
</compile_context>

<pallas_src>
import functools

import jax
import jax.numpy as jnp
from jax.experimental import pallas as pl
from jax.experimental.pallas import tpu as pltpu

_MiB = 1024 * 1024


def _round_up(x, m):
    return ((x + m - 1) // m) * m


def _vmem_budgets():
    """(tile-sizing budget, compiler vmem_limit_bytes), generation-aware."""
    try:
        cap = int(pltpu.get_tpu_info().vmem_capacity_bytes)
    except Exception:  # pragma: no cover - conservative fallback
        cap = 64 * _MiB
    if cap <= 64 * _MiB:            # v7x-class: 64 MiB physical per TC
        return 40 * _MiB, 48 * _MiB
    return 64 * _MiB, 80 * _MiB     # v5e / v6e: 128 MiB physical


def _soft_argmin_kernel(cost_ref, disp_ref, out_ref, *, temperature, normalize):
    # cost_ref / disp_ref: [1, D, tile_l] block; out_ref: [1, 1, tile_l].
    #
    # SAFETY NOTE: the last spatial block may be ragged (L % tile_l != 0), so
    # out-of-bounds lanes hold undefined data.  This is safe ONLY because
    # every reduction below is along the D axis (sublanes) -- values never
    # cross lanes -- and OOB output lanes are masked on store.  Do not add
    # any cross-lane reduction here without reinstating explicit padding.
    cost = cost_ref[...].astype(jnp.float32)
    if temperature != 1.0:
        cost = cost * jnp.float32(temperature)
    disp = disp_ref[...].astype(jnp.float32)

    if normalize:
        # Single-pass softmax-weighted sum (never materialize prob[D, tile]).
        m = jnp.max(cost, axis=1, keepdims=True)            # [1, 1, tile]
        e = jnp.exp(cost - m)                                # [1, D, tile]
        num = jnp.sum(e * disp, axis=1, keepdims=True)       # [1, 1, tile]
        den = jnp.sum(e, axis=1, keepdims=True)              # [1, 1, tile] >= 1
        # Exact divide on the reduced vector is essentially free and keeps
        # bit-level parity with the framework softmax much tighter than an
        # approximate reciprocal would.
        out_ref[...] = (num / den).astype(out_ref.dtype)
    else:
        out_ref[...] = jnp.sum(cost * disp, axis=1,
                               keepdims=True).astype(out_ref.dtype)


def soft_argmin(cost_volume, disp_sample, temperature=1.0, normalize=True,
                target_block_bytes=2 * _MiB):
    """Pallas soft-argmin.

    Args:
      cost_volume: [B, D, H, W]  (bf16 inputs are fine; kernel upcasts to f32)
      disp_sample: [B, D, H, W]
    Returns:
      disp_map: [B, 1, H, W]  (same dtype as cost_volume)
    """
    if cost_volume.ndim != 4:
        raise ValueError(
            "expected 4D input (got {}D input)".format(cost_volume.ndim))
    assert cost_volume.shape == disp_sample.shape, (
        "The shape of disparity samples and cost volume should be consistent!")

    B, D, H, W = cost_volume.shape
    L = H * W
    itemsize = jnp.dtype(cost_volume.dtype).itemsize
    out_dtype = cost_volume.dtype

    vmem_budget, vmem_limit = _vmem_budgets()

    # --- pick a lane-dense (multiple of 128) spatial tile ---------------------
    # Per lane column:
    #   2 inputs x 2 pipeline buffers x D x itemsize      (BlockSpec DMA bufs)
    # + ~3 f32 [D, tile] temporaries (cost upcast, exp, disp upcast)
    # + double-buffered [1, tile] output.
    bytes_per_lane = D * (4 * itemsize + 12) + 2 * itemsize
    tile_from_vmem = (vmem_budget // bytes_per_lane) // 128 * 128
    tile_from_target = (target_block_bytes // (D * itemsize)) // 128 * 128
    tile_l = int(max(128, min(tile_from_target, tile_from_vmem,
                              _round_up(L, 128))))
    n_l = -(-L // tile_l)

    # v7x has 2 TensorCores: avoid a 1-step grid when we can split spatially.
    if B * n_l < 2 and L > 128:
        tile_l = int(max(128, _round_up(-(-L // 2), 128)))
        n_l = -(-L // tile_l)

    # --- flatten spatial dims (no padding; last block is ragged/masked) ------
    cost_f = cost_volume.reshape(B, D, L)
    disp_f = disp_sample.reshape(B, D, L)

    kernel = functools.partial(
        _soft_argmin_kernel,
        temperature=float(temperature),
        normalize=bool(normalize),
    )

    cost_estimate = pl.CostEstimate(
        flops=5 * B * D * L,
        transcendentals=(B * D * L) if normalize else 0,
        bytes_accessed=2 * B * D * L * itemsize + B * L * itemsize,
    )

    out_flat = pl.pallas_call(
        kernel,
        out_shape=jax.ShapeDtypeStruct((B, 1, L), out_dtype),
        grid_spec=pltpu.PrefetchScalarGridSpec(
            num_scalar_prefetch=0,
            grid=(B, n_l),
            in_specs=[
                pl.BlockSpec((1, D, tile_l), lambda b, j: (b, 0, j)),
                pl.BlockSpec((1, D, tile_l), lambda b, j: (b, 0, j)),
            ],
            out_specs=pl.BlockSpec((1, 1, tile_l), lambda b, j: (b, 0, j)),
        ),
        compiler_params=pltpu.CompilerParams(
            dimension_semantics=("parallel", "parallel"),
            vmem_limit_bytes=vmem_limit,
        ),
        cost_estimate=cost_estimate,
    )(cost_f, disp_f)

    return out_flat.reshape(B, 1, H, W)


def _reference(cost_volume, disp_sample, temperature=1.0, normalize=True):
    cost = cost_volume.astype(jnp.float32) * temperature
    if normalize:
        prob = jax.nn.softmax(cost, axis=1)
    else:
        prob = cost
    return jnp.sum(prob * disp_sample.astype(jnp.float32),
                   axis=1, keepdims=True).astype(cost_volume.dtype)


if __name__ == "__main__":
    key = jax.random.PRNGKey(0)
    k1, k2, k3, k4, k5, k6 = jax.random.split(key, 6)

    # --- test 1: normalize=True, 128-aligned spatial size --------------------
    B, D, H, W = 2, 8, 16, 16
    cost_volume = jax.random.normal(k1, (B, D, H, W), dtype=jnp.float32)
    base = jnp.arange(D, dtype=jnp.float32).reshape(1, D, 1, 1)
    disp_sample = base + 0.01 * jax.random.normal(k2, (B, D, H, W),
                                                  dtype=jnp.float32)
    out = soft_argmin(cost_volume, disp_sample, temperature=1.0,
                      normalize=True)
    out = jax.block_until_ready(out)
    ref = _reference(cost_volume, disp_sample, temperature=1.0,
                     normalize=True)
    assert out.shape == (B, 1, H, W), out.shape
    assert jnp.allclose(out, ref, atol=2e-5, rtol=2e-5), (
        float(jnp.max(jnp.abs(out - ref))))

    # --- test 2: normalize=False, odd D and odd spatial size (ragged block) --
    B2, D2, H2, W2 = 2, 10, 10, 12
    cost2 = jax.random.normal(k3, (B2, D2, H2, W2), dtype=jnp.float32)
    disp2 = (jnp.arange(D2, dtype=jnp.float32).reshape(1, D2, 1, 1)
             + 0.01 * jax.random.normal(k4, (B2, D2, H2, W2),
                                        dtype=jnp.float32))
    out2 = soft_argmin(cost2, disp2, temperature=0.5, normalize=False)
    out2 = jax.block_until_ready(out2)
    ref2 = _reference(cost2, disp2, temperature=0.5, normalize=False)
    assert out2.shape == (B2, 1, H2, W2), out2.shape
    assert jnp.allclose(out2, ref2, atol=1e-5, rtol=1e-5), (
        float(jnp.max(jnp.abs(out2 - ref2))))

    # --- test 3: bf16 inputs, B=1 (exercises the >=2-grid-step split) --------
    B3, D3, H3, W3 = 1, 16, 24, 20
    cost3 = jax.random.normal(k5, (B3, D3, H3, W3)).astype(jnp.bfloat16)
    disp3 = (jnp.arange(D3, dtype=jnp.float32).reshape(1, D3, 1, 1)
             + 0.01 * jax.random.normal(k6, (B3, D3, H3, W3))
             ).astype(jnp.bfloat16)
    out3 = soft_argmin(cost3, disp3, temperature=2.0, normalize=True)
    out3 = jax.block_until_ready(out3)
    ref3 = _reference(cost3, disp3, temperature=2.0, normalize=True)
    assert out3.shape == (B3, 1, H3, W3), out3.shape
    assert jnp.allclose(out3.astype(jnp.float32), ref3.astype(jnp.float32),
                        atol=5e-2, rtol=5e-2), (
        float(jnp.max(jnp.abs(out3.astype(jnp.float32)
                              - ref3.astype(jnp.float32)))))

    print("KERNEL_OK")
</pallas_src>

<mosaic_0001>
module attributes {stable_mosaic.version = 11 : i64} {
  func.func @_soft_argmin_kernel(%arg0: i32, %arg1: i32, %arg2: memref<1x8x256xf32, #tpu.memory_space<vmem>>, %arg3: memref<1x8x256xf32, #tpu.memory_space<vmem>>, %arg4: memref<1x1x256xf32, #tpu.memory_space<vmem>>) attributes {dimension_semantics = [#tpu.dimension_semantics<parallel>, #tpu.dimension_semantics<parallel>], iteration_bounds = array<i64: 2, 1>, scalar_prefetch = 0 : i64, scratch_operands = 0 : i64, tpu.core_type = #tpu.core_type<tc>, window_params = [{transform_indices = @transform_0, window_bounds = array<i64: 1, 8, 256>}, {transform_indices = @transform_1, window_bounds = array<i64: 1, 8, 256>}, {transform_indices = @transform_2, window_bounds = array<i64: 1, 1, 256>}]} {
    %c0 = arith.constant 0 : index
    %c0_0 = arith.constant 0 : index
    %c0_1 = arith.constant 0 : index
    %0 = vector.load %arg2[%c0, %c0_0, %c0_1] : memref<1x8x256xf32, #tpu.memory_space<vmem>>, vector<1x8x256xf32>
    %c0_2 = arith.constant 0 : index
    %c0_3 = arith.constant 0 : index
    %c0_4 = arith.constant 0 : index
    %1 = vector.load %arg3[%c0_2, %c0_3, %c0_4] : memref<1x8x256xf32, #tpu.memory_space<vmem>>, vector<1x8x256xf32>
    %cst = arith.constant dense<0xFF800000> : vector<1x256xf32>
    %2 = vector.multi_reduction <maximumf>, %0, %cst [1] : vector<1x8x256xf32> to vector<1x256xf32>
    %3 = vector.shape_cast %2 : vector<1x256xf32> to vector<1x1x256xf32>
    %4 = vector.broadcast %3 : vector<1x1x256xf32> to vector<1x8x256xf32>
    %5 = arith.subf %0, %4 : vector<1x8x256xf32>
    %6 = math.exp %5 : vector<1x8x256xf32>
    %7 = arith.mulf %6, %1 : vector<1x8x256xf32>
    %cst_5 = arith.constant dense<0.000000e+00> : vector<1x256xf32>
    %8 = vector.multi_reduction <add>, %7, %cst_5 [1] : vector<1x8x256xf32> to vector<1x256xf32>
    %9 = vector.shape_cast %8 : vector<1x256xf32> to vector<1x1x256xf32>
    %cst_6 = arith.constant dense<0.000000e+00> : vector<1x256xf32>
    %10 = vector.multi_reduction <add>, %6, %cst_6 [1] : vector<1x8x256xf32> to vector<1x256xf32>
    %11 = vector.shape_cast %10 : vector<1x256xf32> to vector<1x1x256xf32>
    %12 = arith.divf %9, %11 : vector<1x1x256xf32>
    %c0_7 = arith.constant 0 : index
    %c0_8 = arith.constant 0 : index
    %c0_9 = arith.constant 0 : index
    %13 = vector.load %arg4[%c0_7, %c0_8, %c0_9] : memref<1x1x256xf32, #tpu.memory_space<vmem>>, vector<1x1x256xf32>
    tpu.vector_store %arg4[%c0_7, %c0_8, %c0_9], %12 {strides = array<i32>} : memref<1x1x256xf32, #tpu.memory_space<vmem>>, vector<1x1x256xf32>,
    return
  }
  func.func @transform_0(%arg0: i32, %arg1: i32) -> (i32, i32, i32) {
    %c0_i32 = arith.constant 0 : i32
    %c0_i32_0 = arith.constant 0 : i32
    return %arg0, %c0_i32, %arg1 : i32, i32, i32
  }
  func.func @transform_1(%arg0: i32, %arg1: i32) -> (i32, i32, i32) {
    %c0_i32 = arith.constant 0 : i32
    %c0_i32_0 = arith.constant 0 : i32
    return %arg0, %c0_i32, %arg1 : i32, i32, i32
  }
  func.func @transform_2(%arg0: i32, %arg1: i32) -> (i32, i32, i32) {
    %c0_i32 = arith.constant 0 : i32
    %c0_i32_0 = arith.constant 0 : i32
    return %arg0, %c0_i32, %arg1 : i32, i32, i32
  }
}

</mosaic_0001>

<llo_original>
// kernel: tpu_custom_call.1
$region0: #{tpu_custom_call.1}
  #allocation0 [shape = 'u32[]', space=smem, size = 0x4, offset = 0x4, fixed_abs, tag = 'smem constant byte address 0x4 - core index']
  #allocation1 [shape = 'u32[144,128]{1,0:T(1,128)}', space=vmem, size = 0x12000, scoped, tag = 'internal scratch']
  %s0 = inlined_call_operand.hbm [shape: f32[2,8,256], index: 0, kind: input, shape index: {}]
  %s1 = inlined_call_operand.hbm [shape: f32[2,8,256], index: 1, kind: input, shape index: {}]
  %s2 = inlined_call_operand.hbm [shape: f32[2,1,256], index: 2, kind: output, shape index: {}]
  %s3 = sld [smem:[#allocation0]]
  $region49: #{tpu_custom_call.1} parent=0
    _
  %s5 = ssub.s32 1, %s3
  %s6 = scalar_select 0, %s5, %s3
  $region1: #{tpu_custom_call.1} parent=0
    #allocation2 [shape = 'u8[16384]{0}', space=vmem, size = 0x4000, scoped, tag = 'input window, operand 0']
    #allocation3 [shape = 's32[2]{0}', space=sflag, size = 0x8, scoped, tag = 'scoped memory for tpu_custom_call.1']
    #allocation4 [shape = 's32[2]{0}', space=sflag, size = 0x8, scoped, tag = 'scoped memory for tpu_custom_call.1']
    #allocation5 [shape = 'u8[16384]{0}', space=vmem, size = 0x4000, scoped, tag = 'input window, operand 1']
    #allocation6 [shape = 's32[2]{0}', space=sflag, size = 0x8, scoped, tag = 'scoped memory for tpu_custom_call.1']
    #allocation7 [shape = 'u8[2048]{0}', space=vmem, size = 0x800, scoped, tag = 'output window, operand 0']
    %7 = vsyncpa [#allocation3], 0
    %s8 = scalar_lea.sflag [#allocation3], 1
    %9 = vsyncpa %s8, 0
    %10 = vsyncpa [#allocation6], 0
    %s11 = scalar_lea.sflag [#allocation6], 1
    %12 = vsyncpa %s11, 0
    %13 = vsyncpa [#allocation4], 0
    %s14 = scalar_lea.sflag [#allocation4], 1
    %15 = vsyncpa %s14, 0
    loop: start=0, step=1, limit=4
    $region2: #{tpu_custom_call.1} parent=1 // loop_pre_header
      _
    $region3: #{tpu_custom_call.1} parent=1 // loop_header
      %s17 = sphi 0, %s21
      %p18 = scmp.ge.s32.totalorder %s17, 4
      %s24 = sphi 0, %s36
      %s25 = sphi 0, %s32
      %s26 = sphi 0, %s24
      %s27 = sphi 0, %s25
      %s28 = sphi 0, %s26
      %s29 = sphi 0, %s27
      %s41 = sphi 0, %s43
      %s44 = sphi 0, %s41
      %s45 = sphi 0, %s44
      %s61 = sphi 0, %s45
      %s69 = sphi 0, %s71
      %s72 = sphi 0, %s69
      %s73 = sphi 0, %s72
      %s89 = sphi 0, %s73
      %s97 = sphi 0, %s99
      %s100 = sphi 0, %s97
      %s101 = sphi 0, %s100
      %s117 = sphi 0, %s101
    $region4: #{tpu_custom_call.1} parent=1 // loop_header_branch
      %20 = sbr.rel (%p18) target = $region8
    $region5: #{tpu_custom_call.1} parent=1 // loop_body
      %s22 = ssub.s32 %s17, 1
      %s23 = ssub.s32 %s17, 2
      %s30 = sadd.s32 1, %s25
      %p31 = scmp.ge.s32.totalorder %s30, 1
      %s32 = scalar_select %p31, 0, %s30
      %s33 = sadd.s32 1, %s24
      %s34 = scalar_select %p31, %s33, %s24
      %p35 = scmp.ge.s32.totalorder %s34, 2
      %s36 = scalar_select %p35, 0, %s34
      %s37 = ssub.s32 %s24, %s36
      %s38 = ssub.s32 %s25, %s32
      %s39 = sor.u32 %s37, %s38
      %p40 = scmp.eq.s32.totalorder %s39, 0
      %s42 = sadd.s32 %s41, 1
      %s43 = scalar_select %p40, %s41, %s42
      %p46 = pneg %p40
      %p47 = scmp.eq.s32.totalorder %s17, 1
      %p48 = por %p46, %p47
      %p49 = scmp.ne.s32.totalorder %s41, %s44
      %p50 = scmp.eq.s32.totalorder %s17, 0
      %p51 = por %p49, %p50
      %p52 = scmp.ne.s32.totalorder %s41, %s44
      %p53 = scmp.eq.s32.totalorder %s22, 1
      %p54 = por %p52, %p53
      %p55 = scmp.ne.s32.totalorder %s44, %s45
      %p56 = scmp.eq.s32.totalorder %s22, 0
      %p57 = por %p55, %p56
      %p58 = scmp.ne.s32.totalorder %s44, %s45
      %p59 = scmp.eq.s32.totalorder %s23, 1
      %p60 = por %p58, %p59
      %p62 = scmp.ne.s32.totalorder %s45, %s61
      %p63 = scmp.eq.s32.totalorder %s23, 0
      %p64 = por %p62, %p63
      %s65 = ssub.s32 %s24, %s36
      %s66 = ssub.s32 %s25, %s32
      %s67 = sor.u32 %s65, %s66
      %p68 = scmp.eq.s32.totalorder %s67, 0
      %s70 = sadd.s32 %s69, 1
      %s71 = scalar_select %p68, %s69, %s70
      %p74 = pneg %p68
      %p75 = scmp.eq.s32.totalorder %s17, 1
      %p76 = por %p74, %p75
      %p77 = scmp.ne.s32.totalorder %s69, %s72
      %p78 = scmp.eq.s32.totalorder %s17, 0
      %p79 = por %p77, %p78
      %p80 = scmp.ne.s32.totalorder %s69, %s72
      %p81 = scmp.eq.s32.totalorder %s22, 1
      %p82 = por %p80, %p81
      %p83 = scmp.ne.s32.totalorder %s72, %s73
      %p84 = scmp.eq.s32.totalorder %s22, 0
      %p85 = por %p83, %p84
      %p86 = scmp.ne.s32.totalorder %s72, %s73
      %p87 = scmp.eq.s32.totalorder %s23, 1
      %p88 = por %p86, %p87
      %p90 = scmp.ne.s32.totalorder %s73, %s89
      %p91 = scmp.eq.s32.totalorder %s23, 0
      %p92 = por %p90, %p91
      %s93 = ssub.s32 %s24, %s36
      %s94 = ssub.s32 %s25, %s32
      %s95 = sor.u32 %s93, %s94
      %p96 = scmp.eq.s32.totalorder %s95, 0
      %s98 = sadd.s32 %s97, 1
      %s99 = scalar_select %p96, %s97, %s98
      %p102 = pneg %p96
      %p103 = scmp.eq.s32.totalorder %s17, 1
      %p104 = por %p102, %p103
      %p105 = scmp.ne.s32.totalorder %s97, %s100
      %p106 = scmp.eq.s32.totalorder %s17, 0
      %p107 = por %p105, %p106
      %p108 = scmp.ne.s32.totalorder %s97, %s100
      %p109 = scmp.eq.s32.totalorder %s22, 1
      %p110 = por %p108, %p109
      %p111 = scmp.ne.s32.totalorder %s100, %s101
      %p112 = scmp.eq.s32.totalorder %s22, 0
      %p113 = por %p111, %p112
      %p114 = scmp.ne.s32.totalorder %s100, %s101
      %p115 = scmp.eq.s32.totalorder %s23, 1
      %p116 = por %p114, %p115
      %p118 = scmp.ne.s32.totalorder %s101, %s117
      %p119 = scmp.eq.s32.totalorder %s23, 0
      %p120 = por %p118, %p119
      %p121 = scmp.le.s32.totalorder 1, %s17
      %p122 = scmp.lt.s32.totalorder %s17, 3
      %p123 = pnand %p121, %p122
      %p124 = pneg %p123
      // Predicated region
      $region9: #{tpu_custom_call.1} parent=5 // pred_check
        _
      $region10: #{tpu_custom_call.1} parent=5 // pred_check_branch
        %126 = sbr.rel (%p123) target = $region12
      $region11: #{tpu_custom_call.1} parent=5 // pred_region
        %s127 = ssub.s32 %s17, 1
      $region12: #{tpu_custom_call.1} parent=5 // pred_fallthru
        _
      %p128 = scmp.lt.s32.totalorder %s17, 2
      // Predicated region
      $region13: #{tpu_custom_call.1} parent=5 // pred_check
        %p129 = pneg %p128
      $region14: #{tpu_custom_call.1} parent=5 // pred_check_branch
        %131 = sbr.rel (%p129) target = $region16
      $region15: #{tpu_custom_call.1} parent=5 // pred_region
        // Predicated region
        $region17: #{tpu_custom_call.1} parent=15 // pred_check
          %p132 = pneg %p51
        $region18: #{tpu_custom_call.1} parent=15 // pred_check_branch
          %134 = sbr.rel (%p132) target = $region20
        $region19: #{tpu_custom_call.1} parent=15 // pred_region
          %s135 = sand.u32 %s41, 1
          %s136 = scalar_lea.sflag [#allocation3], %s135
          %s137 = sand.u32 %s41, 1
          %s138 = smul.addr %s137, 16
          %s139 = scalar_lea.vmem [#allocation2], %s138
          %s140 = smul.u32 2, %s25
          %s142 = ssub.s32 256, 256
          %143 = vsyncadd %s136, %s142
          %s144 = smul.addr %s24, 2
          %s145 = sadd.s32 %s140, %s144
          %s146 = smul.addr %s145, 128
          %s147 = scalar_lea.hbm %s0, %s146
          %s149 = sshll.u32 %s139, 4
          %s150 = int_to_ptr.vmem [resolvable:$true] %s149
          %152 = dma.hbm_to_vmem [thread:$0]  %s147, 256, %s150, %s136
        $region20: #{tpu_custom_call.1} parent=15 // pred_fallthru
          _
        // Predicated region
        $region21: #{tpu_custom_call.1} parent=15 // pred_check
          %p153 = pneg %p79
        $region22: #{tpu_custom_call.1} parent=15 // pred_check_branch
          %155 = sbr.rel (%p153) target = $region24
        $region23: #{tpu_custom_call.1} parent=15 // pred_region
          %s156 = sand.u32 %s69, 1
          %s157 = scalar_lea.sflag [#allocation6], %s156
          %s158 = sand.u32 %s69, 1
          %s159 = smul.addr %s158, 16
          %s160 = scalar_lea.vmem [#allocation5], %s159
          %s161 = smul.u32 2, %s25
          %s163 = ssub.s32 256, 256
          %164 = vsyncadd %s157, %s163
          %s165 = smul.addr %s24, 2
          %s166 = sadd.s32 %s161, %s165
          %s167 = smul.addr %s166, 128
          %s168 = scalar_lea.hbm %s1, %s167
          %s170 = sshll.u32 %s160, 4
          %s171 = int_to_ptr.vmem [resolvable:$true] %s170
          %173 = dma.hbm_to_vmem [thread:$0]  %s168, 256, %s171, %s157
        $region24: #{tpu_custom_call.1} parent=15 // pred_fallthru
          _
      $region16: #{tpu_custom_call.1} parent=5 // pred_fallthru
        _
      %p174 = scmp.le.s32.totalorder 1, %s17
      %p175 = scmp.lt.s32.totalorder %s17, 3
      %p176 = pnand %p174, %p175
      %p177 = pneg %p176
      // Predicated region
      $region25: #{tpu_custom_call.1} parent=5 // pred_check
        _
      $region26: #{tpu_custom_call.1} parent=5 // pred_check_branch
        %179 = sbr.rel (%p176) target = $region28
      $region27: #{tpu_custom_call.1} parent=5 // pred_region
        %s180 = ssub.s32 %s17, 1
        %s181 = sand.u32 %s44, 1
        %s182 = scalar_lea.sflag [#allocation3], %s181
        %s183 = sand.u32 %s44, 1
        %s184 = smul.addr %s183, 16
        %s185 = scalar_lea.vmem [#allocation2], %s184
        // Predicated region
        $region29: #{tpu_custom_call.1} parent=27 // pred_check
          %p186 = pneg %p57
        $region30: #{tpu_custom_call.1} parent=27 // pred_check_branch
          %188 = sbr.rel (%p186) target = $region32
        $region31: #{tpu_custom_call.1} parent=27 // pred_region
          %189 = dma.done %s182, 256
        $region32: #{tpu_custom_call.1} parent=27 // pred_fallthru
          _
        %s190 = sand.u32 %s72, 1
        %s191 = scalar_lea.sflag [#allocation6], %s190
        %s192 = sand.u32 %s72, 1
        %s193 = smul.addr %s192, 16
        %s194 = scalar_lea.vmem [#allocation5], %s193
        // Predicated region
        $region33: #{tpu_custom_call.1} parent=27 // pred_check
          %p195 = pneg %p85
        $region34: #{tpu_custom_call.1} parent=27 // pred_check_branch
          %197 = sbr.rel (%p195) target = $region36
        $region35: #{tpu_custom_call.1} parent=27 // pred_region
          %198 = dma.done %s191, 256
        $region36: #{tpu_custom_call.1} parent=27 // pred_fallthru
          _
        %s199 = sand.u32 %s44, 1
        %s200 = scalar_lea.sflag [#allocation3], %s199
        %s201 = sand.u32 %s44, 1
        %s202 = smul.addr %s201, 16
        %s203 = scalar_lea.vmem [#allocation2], %s202
        %p204 = pneg %p57
        %p205 = pneg %p54
        %s206 = sand.u32 %s72, 1
        %s207 = scalar_lea.sflag [#allocation6], %s206
        %s208 = sand.u32 %s72, 1
        %s209 = smul.addr %s208, 16
        %s210 = scalar_lea.vmem [#allocation5], %s209
        %p211 = pneg %p85
        %p212 = pneg %p82
        %p213 = pneg %p113
        %p214 = pneg %p110
        %s215 = sand.u32 %s100, 1
        %s216 = scalar_lea.sflag [#allocation4], %s215
        %s217 = sand.u32 %s100, 1
        %s218 = smul.addr %s217, 2
        %s219 = scalar_lea.vmem [#allocation7], %s218
        %s220 = smul.u32 2, %s27
        %s221 = smul.u32 2, %s27
        %s222 = smul.u32 2, %s27
        %v223 = vld [vmem:[%s185] sm:$0xff]
        %v224 = vld [vmem:[%s185 + $0x8] sm:$0xff]
        %v225 = vld [vmem:[%s194] sm:$0xff]
        %v226 = vld [vmem:[%s194 + $0x8] sm:$0xff]
        %v227 = vrot.slane %v223, 4
        %v228 = vmax.f32 %v223, %v227
        %v229 = vrot.slane %v228, 2
        %v230 = vmax.f32 %v228, %v229
        %v231 = vrot.slane %v230, 1
        %v232 = vmax.f32 %v230, %v231
        %v233 = vrot.slane %v224, 4
        %v234 = vmax.f32 %v224, %v233
        %v235 = vrot.slane %v234, 2
        %v236 = vmax.f32 %v234, %v235
        %v237 = vrot.slane %v236, 1
        %v238 = vmax.f32 %v236, %v237
        %v239 = vsub.f32 %v223, %v232
        %v240 = vsub.f32 %v224, %v238
        %v241 = vmul.f32 %v239, 1.442695
        %v242 = vpow.pop %v241
        %v243 = vmul.f32 %v240, 1.442695
        %v244 = vpow.pop %v243
        %v245 = vmul.f32 %v242, %v225
        %v246 = vmul.f32 %v244, %v226
        %v247 = vrot.slane %v245, 4
        %v248 = vadd.f32 %v245, %v247
        %v249 = vrot.slane %v248, 2
        %v250 = vadd.f32 %v248, %v249
        %v251 = vrot.slane %v250, 1
        %v252 = vadd.f32 %v250, %v251
        %v253 = vrot.slane %v246, 4
        %v254 = vadd.f32 %v246, %v253
        %v255 = vrot.slane %v254, 2
        %v256 = vadd.f32 %v254, %v255
        %v257 = vrot.slane %v256, 1
        %v258 = vadd.f32 %v256, %v257
        %v259 = vrot.slane %v242, 4
        %v260 = vadd.f32 %v242, %v259
        %v261 = vrot.slane %v260, 2
        %v262 = vadd.f32 %v260, %v261
        %v263 = vrot.slane %v262, 1
        %v264 = vadd.f32 %v262, %v263
        %v265 = vrot.slane %v244, 4
        %v266 = vadd.f32 %v244, %v265
        %v267 = vrot.slane %v266, 2
        %v268 = vadd.f32 %v266, %v267
        %v269 = vrot.slane %v268, 1
        %v270 = vadd.f32 %v268, %v269
        %v271 = vrcp.pop %v264
        %v272 = vmul.f32 %v252, %v271
        %v273 = vrcp.pop %v270
        %v274 = vmul.f32 %v258, %v273
        %v277 = vcombine.low %v272, %v274
        %v279 = vunpack.c.l.s4 1966171168
        %v280 = vunpack.c.0.s8 %v279
        %v281 = vlaneseq
        %v282 = vshrl.u32 %v281, 7
        %v283 = vsub.s32 %v280, %v282
        %v284 = vrot.slane %v277, %v283
        %v286 = vunpack.c.l.s4 1966171168
        %v287 = vunpack.c.0.s8 %v286
        %v288 = vlaneseq
        %v289 = vshrl.u32 %v288, 7
        %v290 = vsub.s32 %v287, %v289
        %v291 = vrot.slane %v284, %v290
        %v293 = vlaneseq
        %vm294 = vcmp.ge.s32.totalorder %v293, 0
        %vm295 = vcmp.lt.s32.totalorder %v293, 256
        %vm296 = vmand %vm294, %vm295
        %297 = vst.msk [vmem:[%s219] sm:$0x3] %vm296, %v291
        %s298 = sand.u32 %s100, 1
        %s299 = scalar_lea.sflag [#allocation4], %s298
        %s300 = sand.u32 %s100, 1
        %s301 = smul.addr %s300, 2
        %s302 = scalar_lea.vmem [#allocation7], %s301
        // Predicated region
        $region37: #{tpu_custom_call.1} parent=27 // pred_check
          %p303 = pneg %p110
        $region38: #{tpu_custom_call.1} parent=27 // pred_check_branch
          %305 = sbr.rel (%p303) target = $region40
        $region39: #{tpu_custom_call.1} parent=27 // pred_region
          %s306 = smul.u32 2, %s27
          %s308 = ssub.s32 32, 32
          %309 = vsyncadd %s299, %s308
          %s310 = smul.addr %s26, 2
          %s311 = sadd.s32 %s306, %s310
          %s312 = smul.addr %s311, 16
          %s313 = scalar_lea.hbm %s2, %s312
          %s315 = sshll.u32 %s302, 4
          %s316 = int_to_ptr.vmem [resolvable:$true] %s315
          %318 = dma.vmem_to_hbm [thread:$0]  %s316, 32, %s313, %s299
        $region40: #{tpu_custom_call.1} parent=27 // pred_fallthru
          _
      $region28: #{tpu_custom_call.1} parent=5 // pred_fallthru
        _
      %p319 = scmp.le.s32.totalorder 2, %s17
      // Predicated region
      $region41: #{tpu_custom_call.1} parent=5 // pred_check
        %p320 = pneg %p319
      $region42: #{tpu_custom_call.1} parent=5 // pred_check_branch
        %322 = sbr.rel (%p320) target = $region44
      $region43: #{tpu_custom_call.1} parent=5 // pred_region
        %s323 = ssub.s32 %s17, 2
        // Predicated region
        $region45: #{tpu_custom_call.1} parent=43 // pred_check
          %p324 = pneg %p116
        $region46: #{tpu_custom_call.1} parent=43 // pred_check_branch
          %326 = sbr.rel (%p324) target = $region48
        $region47: #{tpu_custom_call.1} parent=43 // pred_region
          %s327 = sand.u32 %s101, 1
          %s328 = scalar_lea.sflag [#allocation4], %s327
          %s329 = sand.u32 %s101, 1
          %s330 = smul.addr %s329, 2
          %s331 = scalar_lea.vmem [#allocation7], %s330
          %332 = dma.done %s328, 32
        $region48: #{tpu_custom_call.1} parent=43 // pred_fallthru
          _
      $region44: #{tpu_custom_call.1} parent=5 // pred_fallthru
        _
    $region6: #{tpu_custom_call.1} parent=1 // loop_footer
      %s21 = sadd.s32 1, %s17
    $region7: #{tpu_custom_call.1} parent=1 // loop_footer_branch
      %16 = sbr.rel target = $region3
    $region8: #{tpu_custom_call.1} parent=1 // loop_exit
      _
    %333 = vsyncpa [#allocation3], 1
    %s334 = scalar_lea.sflag [#allocation3], 1
    %335 = vsyncpa %s334, 1
    %336 = vsyncpa [#allocation6], 1
    %s337 = scalar_lea.sflag [#allocation6], 1
    %338 = vsyncpa %s337, 1
    %339 = vsyncpa [#allocation4], 1
    %s340 = scalar_lea.sflag [#allocation4], 1
    %341 = vsyncpa %s340, 1

</llo_original>
